<compile_context>
chip_gen: v6e
topology: v6e:2x2x1
jax: 0.10.0
libtpu: 0.0.40
codegen_flags: <defaults>
</compile_context>

<pallas_src>
import functools

import jax
import jax.numpy as jnp
from jax.experimental import pallas as pl
from jax.experimental.pallas import tpu as pltpu


def _baseline_kernel(h_ref, w_ref, bias_ref, o_ref, *, out_size):
    """o = relu(h @ W^T + bias) on a (rows, in) tile.  VPU + XLU only, no MXU.

    h_ref:    (rows, in)  f32, VMEM  -- natural batch-major layout
    w_ref:    (out, in)   f32, VMEM  -- PyTorch-native weight layout
    bias_ref: (out,)      f32, SMEM  -- scalar reads
    o_ref:    (rows, out) f32, VMEM
    """
    h = h_ref[...]                                          # (rows, in)
    for o in range(out_size):                               # static, tiny (=1)
        w_row = w_ref[o:o + 1, :]                           # (1, in) lane-dense row
        # matvec as multiply (VPU) + lane-axis reduce (XLU, free slots here):
        y = jnp.sum(h * w_row, axis=-1, keepdims=True)      # (rows, 1)
        y = y + bias_ref[o]                                  # SMEM scalar
        o_ref[:, o:o + 1] = jnp.maximum(y, 0.0)


def _pick_block_rows(n_rows):
    """Row-block size: whole problem if small, else a large divisor of n_rows."""
    if n_rows <= 1024:
        return n_rows                      # single block == full array dim: legal
    for cand in (2048, 1024, 512, 256, 128, 64, 32, 16, 8):
        if n_rows % cand == 0:
            return cand
    return n_rows                          # irregular row count: one big tile


def baseline_network_forward(h_t, weight, bias):
    """b_t = relu(h_t @ weight.T + bias)  (== the PyTorch module's forward).

    h_t:    (B, in)    float32  -- natural layout, no wrapper transposes
    weight: (out, in)  float32  -- PyTorch-native nn.Linear weight layout
    bias:   (out,)     float32
    returns (B, out)   float32
    """
    h_t = jax.lax.stop_gradient(h_t)       # mirrors h_t.detach() (forward only)
    n_rows, in_size = h_t.shape
    out_size = weight.shape[0]

    block_rows = _pick_block_rows(n_rows)
    grid = (pl.cdiv(n_rows, block_rows),)  # exact by construction

    return pl.pallas_call(
        functools.partial(_baseline_kernel, out_size=out_size),
        out_shape=jax.ShapeDtypeStruct((n_rows, out_size), jnp.float32),
        grid=grid,
        in_specs=[
            # h: 1-D row grid, lane axis = in (full extent)
            pl.BlockSpec((block_rows, in_size), lambda i: (i, 0)),
            # weight: same small tile at every grid step (stays resident)
            pl.BlockSpec((out_size, in_size), lambda i: (0, 0)),
            # bias: whole array in SMEM, scalar-indexed in the kernel
            pl.BlockSpec(memory_space=pltpu.MemorySpace.SMEM),
        ],
        out_specs=pl.BlockSpec((block_rows, out_size), lambda i: (i, 0)),
        compiler_params=pltpu.CompilerParams(
            # rows are independent: lets v7x's two TensorCores split the grid
            dimension_semantics=("parallel",),
        ),
    )(h_t, weight, bias)


def init_params(key, input_size, output_size):
    """Deterministic init mimicking nn.Linear default (uniform +/- 1/sqrt(fan_in)).

    Weight is kept in PyTorch-native (out, in) layout -- the kernel consumes it
    directly, so no layout op is ever needed in the wrapper.
    """
    kw, kb = jax.random.split(key)
    bound = 1.0 / (input_size ** 0.5)
    weight = jax.random.uniform(
        kw, (output_size, input_size), jnp.float32, minval=-bound, maxval=bound
    )
    bias = jax.random.uniform(
        kb, (output_size,), jnp.float32, minval=-bound, maxval=bound
    )
    return weight, bias


if __name__ == "__main__":
    key = jax.random.PRNGKey(0)
    k_h, k_p, k_big = jax.random.split(key, 3)

    B = 2
    input_size = 32   # hidden-state size of the core network
    output_size = 1   # baseline is a scalar per example -> (B, 1)

    h_t = jax.random.normal(k_h, (B, input_size), jnp.float32)
    weight, bias = init_params(k_p, input_size, output_size)

    # --- small per-step shape (matches the module's intended use) ---
    b_t = baseline_network_forward(h_t, weight, bias)
    jax.block_until_ready(b_t)

    ref = jnp.maximum(h_t @ weight.T + bias.reshape(1, -1), 0.0)
    assert b_t.shape == (B, output_size)
    assert jnp.allclose(b_t, ref, atol=1e-5, rtol=1e-5)

    # --- amortized path: stack timesteps/rollouts into one call -------------
    # e.g. T=2048 steps x B=2 -> 4096 rows => row grid of 4 blocks x 1024 rows,
    # parallel over TensorCores on v7x, HBM-streaming-bound everywhere.
    h_big = jax.random.normal(k_big, (4096, input_size), jnp.float32)
    b_big = baseline_network_forward(h_big, weight, bias)
    jax.block_until_ready(b_big)
    ref_big = jnp.maximum(h_big @ weight.T + bias.reshape(1, -1), 0.0)
    assert b_big.shape == (4096, output_size)
    assert jnp.allclose(b_big, ref_big, atol=1e-5, rtol=1e-5)

    print("KERNEL_OK")
</pallas_src>

<mosaic_0001>
module attributes {stable_mosaic.version = 11 : i64} {
  func.func @_baseline_kernel(%arg0: i32, %arg1: memref<2x32xf32, #tpu.memory_space<vmem>>, %arg2: memref<1x32xf32, #tpu.memory_space<vmem>>, %arg3: memref<1xf32, #tpu.memory_space<smem>>, %arg4: memref<2x1xf32, #tpu.memory_space<vmem>>) attributes {dimension_semantics = [#tpu.dimension_semantics<parallel>], iteration_bounds = array<i64: 1>, scalar_prefetch = 0 : i64, scratch_operands = 0 : i64, tpu.core_type = #tpu.core_type<tc>, window_params = [{transform_indices = @transform_0, window_bounds = array<i64: 2, 32>}, {pipeline_mode = #tpu.pipeline_mode<synchronous>, transform_indices = @transform_1, window_bounds = array<i64: 1, 32>}, {transform_indices = @transform_2, window_bounds = array<i64: 1>}, {transform_indices = @transform_3, window_bounds = array<i64: 2, 1>}]} {
    %c0 = arith.constant 0 : index
    %c0_0 = arith.constant 0 : index
    %0 = vector.load %arg1[%c0, %c0_0] : memref<2x32xf32, #tpu.memory_space<vmem>>, vector<2x32xf32>
    %c0_1 = arith.constant 0 : index
    %c0_2 = arith.constant 0 : index
    %1 = vector.load %arg2[%c0_1, %c0_2] : memref<1x32xf32, #tpu.memory_space<vmem>>, vector<1x32xf32>
    %2 = vector.broadcast %1 : vector<1x32xf32> to vector<2x32xf32>
    %3 = arith.mulf %0, %2 : vector<2x32xf32>
    %cst = arith.constant dense<0.000000e+00> : vector<2xf32>
    %4 = vector.multi_reduction <add>, %3, %cst [1] : vector<2x32xf32> to vector<2xf32>
    %5 = vector.shape_cast %4 : vector<2xf32> to vector<2x1xf32>
    %c0_3 = arith.constant 0 : index
    %6 = memref.load %arg3[%c0_3] : memref<1xf32, #tpu.memory_space<smem>>
    %7 = vector.broadcast %6 : f32 to vector<2x1xf32>
    %8 = arith.addf %5, %7 : vector<2x1xf32>
    %cst_4 = arith.constant 0.000000e+00 : f32
    %9 = vector.broadcast %cst_4 : f32 to vector<2x1xf32>
    %10 = arith.maximumf %8, %9 : vector<2x1xf32>
    %c0_5 = arith.constant 0 : index
    %c0_6 = arith.constant 0 : index
    %11 = vector.load %arg4[%c0_5, %c0_6] : memref<2x1xf32, #tpu.memory_space<vmem>>, vector<2x1xf32>
    tpu.vector_store %arg4[%c0_5, %c0_6], %10 {strides = array<i32>} : memref<2x1xf32, #tpu.memory_space<vmem>>, vector<2x1xf32>,
    return
  }
  func.func @transform_0(%arg0: i32) -> (i32, i32) {
    %c0_i32 = arith.constant 0 : i32
    %c0_i32_0 = arith.constant 0 : i32
    return %arg0, %c0_i32 : i32, i32
  }
  func.func @transform_1(%arg0: i32) -> (i32, i32) {
    %c0_i32 = arith.constant 0 : i32
    %c0_i32_0 = arith.constant 0 : i32
    %c0_i32_1 = arith.constant 0 : i32
    return %c0_i32, %c0_i32_0 : i32, i32
  }
  func.func @transform_2(%arg0: i32) -> i32 {
    %c0_i32 = arith.constant 0 : i32
    %c0_i32_0 = arith.constant 0 : i32
    return %c0_i32 : i32
  }
  func.func @transform_3(%arg0: i32) -> (i32, i32) {
    %c0_i32 = arith.constant 0 : i32
    %c0_i32_0 = arith.constant 0 : i32
    return %arg0, %c0_i32 : i32, i32
  }
}

</mosaic_0001>

<llo_original>
// kernel: tpu_custom_call.1
$region0: #{tpu_custom_call.1}
  #allocation0 [shape = 'u32[]', space=smem, size = 0x4, offset = 0x4, fixed_abs, tag = 'smem constant byte address 0x4 - core index']
  #allocation1 [shape = 'u32[144,128]{1,0:T(1,128)}', space=vmem, size = 0x12000, scoped, tag = 'internal scratch']
  #allocation2 [shape = 'f32[1]{0:T(128)S(6)}', space=smem, size = 0x200, scoped, tag = 'scoped memory for tpu_custom_call.1']
  %s0 = inlined_call_operand.vmem [shape: f32[2,32], index: 0, kind: input, shape index: {}]
  %s1 = inlined_call_operand.vmem [shape: f32[1,32], index: 1, kind: input, shape index: {}]
  %s2 = inlined_call_operand.<no memory space> [shape: f32[1], index: 2, kind: input, shape index: {}]
  %s3 = inlined_call_operand.vmem [shape: f32[2,1], index: 3, kind: output, shape index: {}]
  %s4 = sld [smem:[#allocation0]]
  $region22: #{tpu_custom_call.1} parent=0
    _
  %s6 = ssub.s32 1, %s4
  %s7 = scalar_select 0, %s6, %s4
  %8 = sst [smem:[#allocation2]] %s2
  // Predicated region
  $region2: #{tpu_custom_call.1} parent=0 // pred_check
    _
  $region3: #{tpu_custom_call.1} parent=0 // pred_check_branch
    %10 = sbr.rel (0) target = $region5
  $region4: #{tpu_custom_call.1} parent=0 // pred_region
    _
  $region5: #{tpu_custom_call.1} parent=0 // pred_fallthru
    _
  // Predicated region
  $region6: #{tpu_custom_call.1} parent=0 // pred_check
    _
  $region7: #{tpu_custom_call.1} parent=0 // pred_check_branch
    %12 = sbr.rel (0) target = $region9
  $region8: #{tpu_custom_call.1} parent=0 // pred_region
    _
  $region9: #{tpu_custom_call.1} parent=0 // pred_fallthru
    _
  // Predicated region
  $region10: #{tpu_custom_call.1} parent=0 // pred_check
    _
  $region11: #{tpu_custom_call.1} parent=0 // pred_check_branch
    %14 = sbr.rel (0) target = $region13
  $region12: #{tpu_custom_call.1} parent=0 // pred_region
    _
  $region13: #{tpu_custom_call.1} parent=0 // pred_fallthru
    _
  %v15 = vld [vmem:[%s0] sm:$0x3]
  %v16 = vld [vmem:[%s1] sm:$0x1]
  %v18 = vlaneseq
  %v19 = vshrl.u32 %v18, 7
  %v20 = vsub.s32 0, %v19
  %v21 = vrot.slane %v16, %v20
  %v23 = vmul.f32 %v15, %v21
  %vm24 = vcmask 254976
  %v25 = vsel %vm24, %v23, 0.0
  %26 = vadd.xlane.f32.xlu0 %v25
  %v27 = vpop.xlane.xlu0 %26
  %s28 = sld [smem:[#allocation2]]
  %v29 = vstv %s28
  %v30 = vadd.f32 %v27, %v29
  %v31 = vmax.f32 %v30, 0.0
  %vm32 = vcmask 1024
  %33 = vst.msk [vmem:[%s3] sm:$0x3] %vm32, %v31
  // Predicated region
  $region14: #{tpu_custom_call.1} parent=0 // pred_check
    _
  $region15: #{tpu_custom_call.1} parent=0 // pred_check_branch
    %35 = sbr.rel (0) target = $region17
  $region16: #{tpu_custom_call.1} parent=0 // pred_region
    _
  $region17: #{tpu_custom_call.1} parent=0 // pred_fallthru
    _
  // Predicated region
  $region18: #{tpu_custom_call.1} parent=0 // pred_check
    _
  $region19: #{tpu_custom_call.1} parent=0 // pred_check_branch
    %37 = sbr.rel (0) target = $region21
  $region20: #{tpu_custom_call.1} parent=0 // pred_region
    _
  $region21: #{tpu_custom_call.1} parent=0 // pred_fallthru
    _

</llo_original>
